<compile_context>
chip_gen: v7x
topology: tpu7x:2x2x1
jax: 0.10.0
libtpu: 0.0.40
codegen_flags: <defaults>
</compile_context>

<pallas_src>
import functools

import jax
import jax.numpy as jnp
from jax.experimental import pallas as pl
from jax.experimental.pallas import tpu as pltpu


def _readout_kernel(x_ref, w1_ref, w2_ref, aux_ref, rc_ref, o_ref, *,
                    height, width):
    """Single-invocation kernel, lane-dense channels-major layout.

    x_ref   : (Cp, P)      concat(h, v), channels-major, zero-padded to Cp=8
    w1_ref  : (Cp, 9*Cp)   conv1 weights, BN1 scale folded, tap-major flat
    w2_ref  : (Cp, 9*Cp)   conv2 weights, BN2 scale folded, tap-major flat
    aux_ref : (Cp, 4)      col0=b1, col1=b2, col2=w3, col3[0]=b3
    rc_ref  : (2, P) int32 row / col index of every lane
    o_ref   : (1, P)       lane-dense sigmoid output
    """
    H, W = height, width
    P = x_ref.shape[1]

    rc = rc_ref[...]
    row = rc[0:1, :]
    col = rc[1:2, :]
    row_ge1 = row >= 1
    row_ltm = row < (H - 1)
    col_ge1 = col >= 1
    col_ltm = col < (W - 1)

    # Per-tap validity masks (float, reused for both convs). Tap (dy, dx) is
    # valid where (row+dy, col+dx) stays inside the image -> reproduces SAME
    # zero padding and kills wrap-around across image/batch boundaries.
    masks = {}
    for dy in (-1, 0, 1):
        for dx in (-1, 0, 1):
            if dy == 0 and dx == 0:
                masks[(dy, dx)] = None
                continue
            m = None
            if dy == -1:
                m = row_ge1
            elif dy == 1:
                m = row_ltm
            if dx == -1:
                m = col_ge1 if m is None else jnp.logical_and(m, col_ge1)
            elif dx == 1:
                m = col_ltm if m is None else jnp.logical_and(m, col_ltm)
            masks[(dy, dx)] = m.astype(jnp.float32)

    def tap_stack(plane):
        """(Cp, P) -> (9*Cp, P): masked lane-rolls of all 9 taps, stacked."""
        planes = []
        for dy in (-1, 0, 1):
            for dx in (-1, 0, 1):
                off = dy * W + dx
                if off == 0:
                    planes.append(plane)
                else:
                    # shifted[c, p] = plane[c, p + off] (wrapped lanes masked)
                    shifted = pltpu.roll(plane, shift=(-off) % P, axis=1)
                    planes.append(shifted * masks[(dy, dx)])
        return jnp.concatenate(planes, axis=0)

    aux = aux_ref[...]
    b1c = aux[:, 0:1]          # (Cp, 1) folded BN1 bias
    b2c = aux[:, 1:2]          # (Cp, 1) folded BN2 bias
    w3c = aux[:, 2:3]          # (Cp, 1) 1x1 conv weights (as column)
    b3s = aux[0:1, 3:4]        # (1, 1)  1x1 conv bias

    # ---- conv1 (BN1 scale folded) + bias + ReLU: one K=9*Cp MXU matmul ----
    x_stack = tap_stack(x_ref[...])                              # (9*Cp, P)
    y1 = jnp.dot(w1_ref[...], x_stack, preferred_element_type=jnp.float32)
    y1 = jnp.maximum(y1 + b1c, 0.0)                              # (Cp, P)

    # ---- conv2 (BN2 scale folded) + bias + ReLU: one K=9*Cp MXU matmul ----
    y1_stack = tap_stack(y1)                                     # (9*Cp, P)
    y2 = jnp.dot(w2_ref[...], y1_stack, preferred_element_type=jnp.float32)
    y2 = jnp.maximum(y2 + b2c, 0.0)                              # (Cp, P)

    # ---- conv3 (1x1, bias) as a sublane reduce + sigmoid; (1, P) store ----
    z = jnp.sum(y2 * w3c, axis=0, keepdims=True) + b3s           # (1, P)
    o_ref[...] = jax.nn.sigmoid(z)


@jax.jit
def readout_forward(h, v, params):
    """NHWC forward matching ReadOut.forward(h, v) (BatchNorm in eval mode)."""
    x = jnp.concatenate([h, v], axis=-1) if v is not None else h
    N, H, W, Cin = x.shape
    w1, s1, b1, w2, s2, b2, w3, b3 = params
    C = w1.shape[3]
    P = N * H * W
    CP = max(8, -(-C // 8) * 8)          # sublane-aligned channel count

    # ---- channels-major lane-dense input, zero-padded to CP sublanes ----
    xc = x.reshape(P, Cin).T                                    # (Cin, P)
    xc = jnp.pad(xc, ((0, CP - Cin), (0, 0)))                   # (CP, P)

    # ---- fold BN scale into conv weights; flatten tap-major ----
    def flat_w(w, s):
        kh, kw, ci, co = w.shape
        ws = w * s.reshape(1, 1, 1, co)                         # fold BN scale
        ws = jnp.transpose(ws, (3, 0, 1, 2))                    # (co, 3, 3, ci)
        ws = jnp.pad(ws, ((0, CP - co), (0, 0), (0, 0), (0, CP - ci)))
        return ws.reshape(CP, 9 * CP)                           # col = tap*CP+ci

    w1f = flat_w(w1, s1)
    w2f = flat_w(w2, s2)

    # ---- pack all small per-channel operands into one (CP, 4) array ----
    def padc(a):
        return jnp.pad(a.reshape(-1), (0, CP - C))

    b3col = jnp.zeros((CP,), jnp.float32).at[0].set(b3.reshape(()))
    aux = jnp.stack([padc(b1), padc(b2), padc(w3), b3col], axis=1)  # (CP, 4)

    # ---- per-lane (row, col) indices (int32), for in-kernel masks ----
    p = jnp.arange(P, dtype=jnp.int32)
    rc = jnp.stack([(p % (H * W)) // W, p % W], axis=0)         # (2, P)

    kernel = functools.partial(_readout_kernel, height=H, width=W)
    vspec = pl.BlockSpec(memory_space=pltpu.MemorySpace.VMEM)

    flops = 2 * P * (2 * 9 * CP * CP + CP)
    bytes_accessed = 4 * (CP * P + 2 * CP * 9 * CP + CP * 4 + 2 * P + P)

    out_flat = pl.pallas_call(
        kernel,
        out_shape=jax.ShapeDtypeStruct((1, P), jnp.float32),
        in_specs=[vspec] * 5,
        out_specs=vspec,
        cost_estimate=pl.CostEstimate(flops=flops, transcendentals=P,
                                      bytes_accessed=bytes_accessed),
    )(xc, w1f, w2f, aux, rc)

    return out_flat.reshape(N, H, W, 1)


def readout_ref(h, v, params):
    """Plain-JAX reference (lax conv) for correctness checking."""
    x = jnp.concatenate([h, v], axis=-1) if v is not None else h
    w1, s1, b1, w2, s2, b2, w3, b3 = params
    dn = ("NHWC", "HWIO", "NHWC")
    y = jax.lax.conv_general_dilated(x, w1, (1, 1), "SAME", dimension_numbers=dn)
    y = jnp.maximum(y * s1[0] + b1[0], 0.0)
    y = jax.lax.conv_general_dilated(y, w2, (1, 1), "SAME", dimension_numbers=dn)
    y = jnp.maximum(y * s2[0] + b2[0], 0.0)
    z = jnp.einsum("nhwc,co->nhwo", y, w3) + b3[0, 0]
    return jax.nn.sigmoid(z)


def make_params(key, in_channels):
    """Deterministic synthetic parameters; BatchNorm (eval) folded to scale/bias."""
    C = in_channels
    eps = 1e-5
    ks = jax.random.split(key, 10)
    w1 = 0.2 * jax.random.normal(ks[0], (3, 3, C, C), jnp.float32)
    w2 = 0.2 * jax.random.normal(ks[1], (3, 3, C, C), jnp.float32)
    w3 = 0.2 * jax.random.normal(ks[2], (C, 1), jnp.float32)
    b3 = 0.1 * jax.random.normal(ks[3], (1, 1), jnp.float32)

    def fold_bn(kg, kb, km, kv):
        gamma = 1.0 + 0.1 * jax.random.uniform(kg, (C,), jnp.float32)
        beta = 0.1 * jax.random.normal(kb, (C,), jnp.float32)
        mean = 0.05 * jax.random.normal(km, (C,), jnp.float32)
        var = 1.0 + 0.1 * jax.random.uniform(kv, (C,), jnp.float32)
        scale = gamma / jnp.sqrt(var + eps)
        bias = beta - mean * scale
        return scale.reshape(1, C), bias.reshape(1, C)

    s1, b1 = fold_bn(ks[4], ks[5], ks[6], ks[7])
    s2, b2 = fold_bn(ks[8], ks[9], ks[4], ks[5])
    return (w1, s1, b1, w2, s2, b2, w3, b3)
    # TODO(synk): training-mode BatchNorm (batch statistics) is not implemented;
    # only eval-mode running stats are supported (folded into scale/bias).


if __name__ == "__main__":
    key = jax.random.PRNGKey(0)
    k_h, k_v, k_p = jax.random.split(key, 3)

    # h: 2 channels, v: 2 channels -> concat gives in_channels = 4
    N, H, W = 2, 16, 16
    Ch, Cv = 2, 2
    in_channels = Ch + Cv

    h = jax.random.normal(k_h, (N, H, W, Ch), jnp.float32)
    v = jax.random.normal(k_v, (N, H, W, Cv), jnp.float32)
    params = make_params(k_p, in_channels)

    out = readout_forward(h, v, params)
    out = jax.block_until_ready(out)

    ref = readout_ref(h, v, params)
    assert out.shape == (N, H, W, 1)
    assert jnp.allclose(out, ref, atol=1e-5, rtol=1e-5), "mismatch vs reference"

    print("KERNEL_OK")
</pallas_src>

<mosaic_0001>
module attributes {stable_mosaic.version = 11 : i64} {
  func.func @_readout_kernel(%arg0: memref<8x512xf32, #tpu.memory_space<vmem>>, %arg1: memref<8x72xf32, #tpu.memory_space<vmem>>, %arg2: memref<8x72xf32, #tpu.memory_space<vmem>>, %arg3: memref<8x4xf32, #tpu.memory_space<vmem>>, %arg4: memref<2x512xi32, #tpu.memory_space<vmem>>, %arg5: memref<1x512xf32, #tpu.memory_space<vmem>>) attributes {dimension_semantics = [], scalar_prefetch = 0 : i64, scratch_operands = 0 : i64, tpu.core_type = #tpu.core_type<tc>} {
    %c0 = arith.constant 0 : index
    %c0_0 = arith.constant 0 : index
    %0 = vector.load %arg4[%c0, %c0_0] : memref<2x512xi32, #tpu.memory_space<vmem>>, vector<2x512xi32>
    %1 = vector.extract_strided_slice %0 {offsets = [0, 0], sizes = [1, 512], strides = [1, 1]} : vector<2x512xi32> to vector<1x512xi32>
    %2 = vector.extract_strided_slice %0 {offsets = [1, 0], sizes = [1, 512], strides = [1, 1]} : vector<2x512xi32> to vector<1x512xi32>
    %c1_i32 = arith.constant 1 : i32
    %3 = vector.broadcast %c1_i32 : i32 to vector<1x512xi32>
    %4 = arith.cmpi sge, %1, %3 : vector<1x512xi32>
    %c15_i32 = arith.constant 15 : i32
    %5 = vector.broadcast %c15_i32 : i32 to vector<1x512xi32>
    %6 = arith.cmpi slt, %1, %5 : vector<1x512xi32>
    %c1_i32_1 = arith.constant 1 : i32
    %7 = vector.broadcast %c1_i32_1 : i32 to vector<1x512xi32>
    %8 = arith.cmpi sge, %2, %7 : vector<1x512xi32>
    %c15_i32_2 = arith.constant 15 : i32
    %9 = vector.broadcast %c15_i32_2 : i32 to vector<1x512xi32>
    %10 = arith.cmpi slt, %2, %9 : vector<1x512xi32>
    %11 = arith.andi %4, %8 : vector<1x512xi1>
    %12 = arith.extui %11 : vector<1x512xi1> to vector<1x512xi32>
    %13 = arith.sitofp %12 : vector<1x512xi32> to vector<1x512xf32>
    %14 = arith.extui %4 : vector<1x512xi1> to vector<1x512xi32>
    %15 = arith.sitofp %14 : vector<1x512xi32> to vector<1x512xf32>
    %16 = arith.andi %4, %10 : vector<1x512xi1>
    %17 = arith.extui %16 : vector<1x512xi1> to vector<1x512xi32>
    %18 = arith.sitofp %17 : vector<1x512xi32> to vector<1x512xf32>
    %19 = arith.extui %8 : vector<1x512xi1> to vector<1x512xi32>
    %20 = arith.sitofp %19 : vector<1x512xi32> to vector<1x512xf32>
    %21 = arith.extui %10 : vector<1x512xi1> to vector<1x512xi32>
    %22 = arith.sitofp %21 : vector<1x512xi32> to vector<1x512xf32>
    %23 = arith.andi %6, %8 : vector<1x512xi1>
    %24 = arith.extui %23 : vector<1x512xi1> to vector<1x512xi32>
    %25 = arith.sitofp %24 : vector<1x512xi32> to vector<1x512xf32>
    %26 = arith.extui %6 : vector<1x512xi1> to vector<1x512xi32>
    %27 = arith.sitofp %26 : vector<1x512xi32> to vector<1x512xf32>
    %28 = arith.andi %6, %10 : vector<1x512xi1>
    %29 = arith.extui %28 : vector<1x512xi1> to vector<1x512xi32>
    %30 = arith.sitofp %29 : vector<1x512xi32> to vector<1x512xf32>
    %c0_3 = arith.constant 0 : index
    %c0_4 = arith.constant 0 : index
    %31 = vector.load %arg3[%c0_3, %c0_4] : memref<8x4xf32, #tpu.memory_space<vmem>>, vector<8x4xf32>
    %32 = vector.extract_strided_slice %31 {offsets = [0, 0], sizes = [8, 1], strides = [1, 1]} : vector<8x4xf32> to vector<8x1xf32>
    %33 = vector.extract_strided_slice %31 {offsets = [0, 1], sizes = [8, 1], strides = [1, 1]} : vector<8x4xf32> to vector<8x1xf32>
    %34 = vector.extract_strided_slice %31 {offsets = [0, 2], sizes = [8, 1], strides = [1, 1]} : vector<8x4xf32> to vector<8x1xf32>
    %35 = vector.extract_strided_slice %31 {offsets = [0, 3], sizes = [1, 1], strides = [1, 1]} : vector<8x4xf32> to vector<1x1xf32>
    %c0_5 = arith.constant 0 : index
    %c0_6 = arith.constant 0 : index
    %36 = vector.load %arg0[%c0_5, %c0_6] : memref<8x512xf32, #tpu.memory_space<vmem>>, vector<8x512xf32>
    %c17_i32 = arith.constant 17 : i32
    %37 = tpu.dynamic_rotate %36 by %c17_i32 dim 1 : vector<8x512xf32>, i32 -> vector<8x512xf32>
    %38 = vector.broadcast %13 : vector<1x512xf32> to vector<8x512xf32>
    %39 = arith.mulf %37, %38 : vector<8x512xf32>
    %c16_i32 = arith.constant 16 : i32
    %40 = tpu.dynamic_rotate %36 by %c16_i32 dim 1 : vector<8x512xf32>, i32 -> vector<8x512xf32>
    %41 = vector.broadcast %15 : vector<1x512xf32> to vector<8x512xf32>
    %42 = arith.mulf %40, %41 : vector<8x512xf32>
    %c15_i32_7 = arith.constant 15 : i32
    %43 = tpu.dynamic_rotate %36 by %c15_i32_7 dim 1 : vector<8x512xf32>, i32 -> vector<8x512xf32>
    %44 = vector.broadcast %18 : vector<1x512xf32> to vector<8x512xf32>
    %45 = arith.mulf %43, %44 : vector<8x512xf32>
    %c1_i32_8 = arith.constant 1 : i32
    %46 = tpu.dynamic_rotate %36 by %c1_i32_8 dim 1 : vector<8x512xf32>, i32 -> vector<8x512xf32>
    %47 = vector.broadcast %20 : vector<1x512xf32> to vector<8x512xf32>
    %48 = arith.mulf %46, %47 : vector<8x512xf32>
    %c511_i32 = arith.constant 511 : i32
    %49 = tpu.dynamic_rotate %36 by %c511_i32 dim 1 : vector<8x512xf32>, i32 -> vector<8x512xf32>
    %50 = vector.broadcast %22 : vector<1x512xf32> to vector<8x512xf32>
    %51 = arith.mulf %49, %50 : vector<8x512xf32>
    %c497_i32 = arith.constant 497 : i32
    %52 = tpu.dynamic_rotate %36 by %c497_i32 dim 1 : vector<8x512xf32>, i32 -> vector<8x512xf32>
    %53 = vector.broadcast %25 : vector<1x512xf32> to vector<8x512xf32>
    %54 = arith.mulf %52, %53 : vector<8x512xf32>
    %c496_i32 = arith.constant 496 : i32
    %55 = tpu.dynamic_rotate %36 by %c496_i32 dim 1 : vector<8x512xf32>, i32 -> vector<8x512xf32>
    %56 = vector.broadcast %27 : vector<1x512xf32> to vector<8x512xf32>
    %57 = arith.mulf %55, %56 : vector<8x512xf32>
    %c495_i32 = arith.constant 495 : i32
    %58 = tpu.dynamic_rotate %36 by %c495_i32 dim 1 : vector<8x512xf32>, i32 -> vector<8x512xf32>
    %59 = vector.broadcast %30 : vector<1x512xf32> to vector<8x512xf32>
    %60 = arith.mulf %58, %59 : vector<8x512xf32>
    %61 = tpu.concatenate %39, %42, %45, %48, %36, %51, %54, %57, %60 in 0 : vector<8x512xf32>, vector<8x512xf32>, vector<8x512xf32>, vector<8x512xf32>, vector<8x512xf32>, vector<8x512xf32>, vector<8x512xf32>, vector<8x512xf32>, vector<8x512xf32> -> vector<72x512xf32>
    %c0_9 = arith.constant 0 : index
    %c0_10 = arith.constant 0 : index
    %62 = vector.load %arg1[%c0_9, %c0_10] : memref<8x72xf32, #tpu.memory_space<vmem>>, vector<8x72xf32>
    %cst = arith.constant dense<0.000000e+00> : vector<8x512xf32>
    %63 = tpu.matmul %62, %61, %cst {dimension_numbers = #tpu.dot_dimension_numbers<[1], [0], [0], [1], [0, 0, 1, 1], [], []>} : vector<8x72xf32>, vector<72x512xf32>, vector<8x512xf32> -> vector<8x512xf32>
    %64 = vector.broadcast %32 : vector<8x1xf32> to vector<8x512xf32>
    %65 = arith.addf %63, %64 : vector<8x512xf32>
    %cst_11 = arith.constant 0.000000e+00 : f32
    %66 = vector.broadcast %cst_11 : f32 to vector<8x512xf32>
    %67 = arith.maximumf %65, %66 : vector<8x512xf32>
    %c17_i32_12 = arith.constant 17 : i32
    %68 = tpu.dynamic_rotate %67 by %c17_i32_12 dim 1 : vector<8x512xf32>, i32 -> vector<8x512xf32>
    %69 = vector.broadcast %13 : vector<1x512xf32> to vector<8x512xf32>
    %70 = arith.mulf %68, %69 : vector<8x512xf32>
    %c16_i32_13 = arith.constant 16 : i32
    %71 = tpu.dynamic_rotate %67 by %c16_i32_13 dim 1 : vector<8x512xf32>, i32 -> vector<8x512xf32>
    %72 = vector.broadcast %15 : vector<1x512xf32> to vector<8x512xf32>
    %73 = arith.mulf %71, %72 : vector<8x512xf32>
    %c15_i32_14 = arith.constant 15 : i32
    %74 = tpu.dynamic_rotate %67 by %c15_i32_14 dim 1 : vector<8x512xf32>, i32 -> vector<8x512xf32>
    %75 = vector.broadcast %18 : vector<1x512xf32> to vector<8x512xf32>
    %76 = arith.mulf %74, %75 : vector<8x512xf32>
    %c1_i32_15 = arith.constant 1 : i32
    %77 = tpu.dynamic_rotate %67 by %c1_i32_15 dim 1 : vector<8x512xf32>, i32 -> vector<8x512xf32>
    %78 = vector.broadcast %20 : vector<1x512xf32> to vector<8x512xf32>
    %79 = arith.mulf %77, %78 : vector<8x512xf32>
    %c511_i32_16 = arith.constant 511 : i32
    %80 = tpu.dynamic_rotate %67 by %c511_i32_16 dim 1 : vector<8x512xf32>, i32 -> vector<8x512xf32>
    %81 = vector.broadcast %22 : vector<1x512xf32> to vector<8x512xf32>
    %82 = arith.mulf %80, %81 : vector<8x512xf32>
    %c497_i32_17 = arith.constant 497 : i32
    %83 = tpu.dynamic_rotate %67 by %c497_i32_17 dim 1 : vector<8x512xf32>, i32 -> vector<8x512xf32>
    %84 = vector.broadcast %25 : vector<1x512xf32> to vector<8x512xf32>
    %85 = arith.mulf %83, %84 : vector<8x512xf32>
    %c496_i32_18 = arith.constant 496 : i32
    %86 = tpu.dynamic_rotate %67 by %c496_i32_18 dim 1 : vector<8x512xf32>, i32 -> vector<8x512xf32>
    %87 = vector.broadcast %27 : vector<1x512xf32> to vector<8x512xf32>
    %88 = arith.mulf %86, %87 : vector<8x512xf32>
    %c495_i32_19 = arith.constant 495 : i32
    %89 = tpu.dynamic_rotate %67 by %c495_i32_19 dim 1 : vector<8x512xf32>, i32 -> vector<8x512xf32>
    %90 = vector.broadcast %30 : vector<1x512xf32> to vector<8x512xf32>
    %91 = arith.mulf %89, %90 : vector<8x512xf32>
    %92 = tpu.concatenate %70, %73, %76, %79, %67, %82, %85, %88, %91 in 0 : vector<8x512xf32>, vector<8x512xf32>, vector<8x512xf32>, vector<8x512xf32>, vector<8x512xf32>, vector<8x512xf32>, vector<8x512xf32>, vector<8x512xf32>, vector<8x512xf32> -> vector<72x512xf32>
    %c0_20 = arith.constant 0 : index
    %c0_21 = arith.constant 0 : index
    %93 = vector.load %arg2[%c0_20, %c0_21] : memref<8x72xf32, #tpu.memory_space<vmem>>, vector<8x72xf32>
    %cst_22 = arith.constant dense<0.000000e+00> : vector<8x512xf32>
    %94 = tpu.matmul %93, %92, %cst_22 {dimension_numbers = #tpu.dot_dimension_numbers<[1], [0], [0], [1], [0, 0, 1, 1], [], []>} : vector<8x72xf32>, vector<72x512xf32>, vector<8x512xf32> -> vector<8x512xf32>
    %95 = vector.broadcast %33 : vector<8x1xf32> to vector<8x512xf32>
    %96 = arith.addf %94, %95 : vector<8x512xf32>
    %cst_23 = arith.constant 0.000000e+00 : f32
    %97 = vector.broadcast %cst_23 : f32 to vector<8x512xf32>
    %98 = arith.maximumf %96, %97 : vector<8x512xf32>
    %99 = vector.broadcast %34 : vector<8x1xf32> to vector<8x512xf32>
    %100 = arith.mulf %98, %99 : vector<8x512xf32>
    %cst_24 = arith.constant dense<0.000000e+00> : vector<512xf32>
    %101 = vector.multi_reduction <add>, %100, %cst_24 [0] : vector<8x512xf32> to vector<512xf32>
    %102 = vector.shape_cast %101 : vector<512xf32> to vector<1x512xf32>
    %103 = vector.broadcast %35 : vector<1x1xf32> to vector<1x512xf32>
    %104 = arith.addf %102, %103 : vector<1x512xf32>
    %105 = arith.negf %104 : vector<1x512xf32>
    %106 = math.exp %105 : vector<1x512xf32>
    %cst_25 = arith.constant 1.000000e+00 : f32
    %107 = vector.broadcast %cst_25 : f32 to vector<1x512xf32>
    %108 = arith.addf %107, %106 : vector<1x512xf32>
    %109 = arith.divf %107, %108 : vector<1x512xf32>
    %c0_26 = arith.constant 0 : index
    %c0_27 = arith.constant 0 : index
    %110 = vector.load %arg5[%c0_26, %c0_27] : memref<1x512xf32, #tpu.memory_space<vmem>>, vector<1x512xf32>
    tpu.vector_store %arg5[%c0_26, %c0_27], %109 {strides = array<i32>} : memref<1x512xf32, #tpu.memory_space<vmem>>, vector<1x512xf32>,
    return
  }
}

</mosaic_0001>

<llo_original>
// kernel: readout_forward.1
$region0: #{readout_forward.1}
  #allocation0 [shape = 'u32[]', space=smem, size = 0x4, offset = 0x4, fixed_abs, tag = 'smem constant byte address 0x4 - core index']
  #allocation1 [shape = 'u32[144,128]{1,0:T(1,128)}', space=vmem, size = 0x12000, scoped, tag = 'internal scratch']
  %s0 = inlined_call_operand.vmem [shape: f32[8,512], index: 0, kind: input, shape index: {}]
  %s1 = inlined_call_operand.vmem [shape: f32[8,72], index: 1, kind: input, shape index: {}]
  %s2 = inlined_call_operand.vmem [shape: f32[8,72], index: 2, kind: input, shape index: {}]
  %s3 = inlined_call_operand.vmem [shape: f32[8,4], index: 3, kind: input, shape index: {}]
  %s4 = inlined_call_operand.vmem [shape: s32[2,512], index: 4, kind: input, shape index: {}]
  %s5 = inlined_call_operand.vmem [shape: f32[1,512], index: 5, kind: output, shape index: {}]
  %s6 = sld [smem:[#allocation0]]
  $region30: #{readout_forward.1} parent=0
    _
  %s8 = ssub.s32 1, %s6
  %s9 = scalar_select 0, %s8, %s6
  // Predicated region
  $region2: #{readout_forward.1} parent=0 // pred_check
    _
  $region3: #{readout_forward.1} parent=0 // pred_check_branch
    %11 = sbr.rel (0) target = $region5
  $region4: #{readout_forward.1} parent=0 // pred_region
    _
  $region5: #{readout_forward.1} parent=0 // pred_fallthru
    _
  // Predicated region
  $region6: #{readout_forward.1} parent=0 // pred_check
    _
  $region7: #{readout_forward.1} parent=0 // pred_check_branch
    %13 = sbr.rel (0) target = $region9
  $region8: #{readout_forward.1} parent=0 // pred_region
    _
  $region9: #{readout_forward.1} parent=0 // pred_fallthru
    _
  // Predicated region
  $region10: #{readout_forward.1} parent=0 // pred_check
    _
  $region11: #{readout_forward.1} parent=0 // pred_check_branch
    %15 = sbr.rel (0) target = $region13
  $region12: #{readout_forward.1} parent=0 // pred_region
    _
  $region13: #{readout_forward.1} parent=0 // pred_fallthru
    _
  // Predicated region
  $region14: #{readout_forward.1} parent=0 // pred_check
    _
  $region15: #{readout_forward.1} parent=0 // pred_check_branch
    %17 = sbr.rel (0) target = $region17
  $region16: #{readout_forward.1} parent=0 // pred_region
    _
  $region17: #{readout_forward.1} parent=0 // pred_fallthru
    _
  // Predicated region
  $region18: #{readout_forward.1} parent=0 // pred_check
    _
  $region19: #{readout_forward.1} parent=0 // pred_check_branch
    %19 = sbr.rel (0) target = $region21
  $region20: #{readout_forward.1} parent=0 // pred_region
    _
  $region21: #{readout_forward.1} parent=0 // pred_fallthru
    _
  %v20 = vld [vmem:[%s4] sm:$0xff]
  %vm21 = vcmp.ge.s32.totalorder %v20, 1
  %vm22 = vcmp.lt.s32.totalorder %v20, 15
  %v23 = vsel %vm21, 1, 0
  %v24 = vrot.slane %v23, 7
  %v25 = vrot.slane %v24, 2
  %vm26 = vcmp.ne.s32.totalorder %v25, 0
  %vm27 = vmand %vm21, %vm26
  %v28 = vsel %vm27, 1, 0
  %v29 = vcvt.s32.f32 %v28
  %v30 = vcvt.s32.f32 %v23
  %v31 = vsel %vm22, 1, 0
  %v32 = vrot.slane %v31, 7
  %v33 = vrot.slane %v32, 2
  %vm34 = vcmp.ne.s32.totalorder %v33, 0
  %vm35 = vmand %vm21, %vm34
  %v36 = vsel %vm35, 1, 0
  %v37 = vcvt.s32.f32 %v36
  %v38 = vcvt.s32.f32 %v31
  %vm39 = vmand %vm22, %vm26
  %v40 = vsel %vm39, 1, 0
  %v41 = vcvt.s32.f32 %v40
  %vm42 = vmand %vm22, %vm34
  %v43 = vsel %vm42, 1, 0
  %v44 = vcvt.s32.f32 %v43
  %v45 = vld [vmem:[%s3] sm:$0xff]
  %v46 = vld [vmem:[%s0] sm:$0xff]
  %v47 = vld [vmem:[%s0 + $0x8] sm:$0xff]
  %v48 = vld [vmem:[%s0 + $0x10] sm:$0xff]
  %v49 = vld [vmem:[%s0 + $0x18] sm:$0xff]
  %50 = vrot.lane.b32.xlu0 %v46, 17
  %v51 = vpop.permute.xlu0 %50
  %52 = vrot.lane.b32.xlu0 %v47, 17
  %v53 = vpop.permute.xlu0 %52
  %54 = vrot.lane.b32.xlu0 %v48, 17
  %v55 = vpop.permute.xlu0 %54
  %56 = vrot.lane.b32.xlu0 %v49, 17
  %v57 = vpop.permute.xlu0 %56
  %v58 = vlaneseq
  %v59 = vand.u32 %v58, 127
  %vm60 = vcmp.lt.s32.totalorder %v59, 17
  %v61 = vsel %vm60, %v55, %v57
  %v62 = vsel %vm60, %v53, %v55
  %v63 = vsel %vm60, %v51, %v53
  %v64 = vsel %vm60, %v57, %v51
  %v66 = vlaneseq
  %v67 = vshrl.u32 %v66, 7
  %v68 = vsub.s32 0, %v67
  %v69 = vrot.slane %v29, %v68
  %v70 = vlaneseq
  %v71 = vshrl.u32 %v70, 7
  %v72 = vsub.s32 2, %v71
  %v73 = vrot.slane %v29, %v72
  %v74 = vlaneseq
  %v75 = vshrl.u32 %v74, 7
  %v76 = vsub.s32 4, %v75
  %v77 = vrot.slane %v29, %v76
  %v78 = vlaneseq
  %v79 = vshrl.u32 %v78, 7
  %v80 = vsub.s32 6, %v79
  %v81 = vrot.slane %v29, %v80
  %v86 = vlaneseq
  %v87 = vshrl.u32 %v86, 7
  %v88 = vsub.s32 0, %v87
  %v89 = vrot.slane %v69, %v88
  %v90 = vlaneseq
  %v91 = vshrl.u32 %v90, 7
  %v92 = vsub.s32 0, %v91
  %v93 = vrot.slane %v73, %v92
  %v94 = vlaneseq
  %v95 = vshrl.u32 %v94, 7
  %v96 = vsub.s32 0, %v95
  %v97 = vrot.slane %v77, %v96
  %v98 = vlaneseq
  %v99 = vshrl.u32 %v98, 7
  %v100 = vsub.s32 0, %v99
  %v101 = vrot.slane %v81, %v100
  %v102 = vmul.f32 %v64, %v89
  %v103 = vmul.f32 %v63, %v93
  %v104 = vmul.f32 %v62, %v97
  %v105 = vmul.f32 %v61, %v101
  %106 = vrot.lane.b32.xlu0 %v46, 16
  %v107 = vpop.permute.xlu0 %106
  %108 = vrot.lane.b32.xlu0 %v47, 16
  %v109 = vpop.permute.xlu0 %108
  %110 = vrot.lane.b32.xlu0 %v48, 16
  %v111 = vpop.permute.xlu0 %110
  %112 = vrot.lane.b32.xlu0 %v49, 16
  %v113 = vpop.permute.xlu0 %112
  %vm114 = vcmp.lt.s32.totalorder %v59, 16
  %v115 = vsel %vm114, %v111, %v113
  %v116 = vsel %vm114, %v109, %v111
  %v117 = vsel %vm114, %v107, %v109
  %v118 = vsel %vm114, %v113, %v107
  %v120 = vlaneseq
  %v121 = vshrl.u32 %v120, 7
  %v122 = vsub.s32 0, %v121
  %v123 = vrot.slane %v30, %v122
  %v124 = vlaneseq
  %v125 = vshrl.u32 %v124, 7
  %v126 = vsub.s32 2, %v125
  %v127 = vrot.slane %v30, %v126
  %v128 = vlaneseq
  %v129 = vshrl.u32 %v128, 7
  %v130 = vsub.s32 4, %v129
  %v131 = vrot.slane %v30, %v130
  %v132 = vlaneseq
  %v133 = vshrl.u32 %v132, 7
  %v134 = vsub.s32 6, %v133
  %v135 = vrot.slane %v30, %v134
  %v140 = vlaneseq
  %v141 = vshrl.u32 %v140, 7
  %v142 = vsub.s32 0, %v141
  %v143 = vrot.slane %v123, %v142
  %v144 = vlaneseq
  %v145 = vshrl.u32 %v144, 7
  %v146 = vsub.s32 0, %v145
  %v147 = vrot.slane %v127, %v146
  %v148 = vlaneseq
  %v149 = vshrl.u32 %v148, 7
  %v150 = vsub.s32 0, %v149
  %v151 = vrot.slane %v131, %v150
  %v152 = vlaneseq
  %v153 = vshrl.u32 %v152, 7
  %v154 = vsub.s32 0, %v153
  %v155 = vrot.slane %v135, %v154
  %v156 = vmul.f32 %v118, %v143
  %v157 = vmul.f32 %v117, %v147
  %v158 = vmul.f32 %v116, %v151
  %v159 = vmul.f32 %v115, %v155
  %160 = vrot.lane.b32.xlu0 %v46, 15
  %v161 = vpop.permute.xlu0 %160
  %162 = vrot.lane.b32.xlu0 %v47, 15
  %v163 = vpop.permute.xlu0 %162
  %164 = vrot.lane.b32.xlu0 %v48, 15
  %v165 = vpop.permute.xlu0 %164
  %166 = vrot.lane.b32.xlu0 %v49, 15
  %v167 = vpop.permute.xlu0 %166
  %vm168 = vcmp.lt.s32.totalorder %v59, 15
  %v169 = vsel %vm168, %v165, %v167
  %v170 = vsel %vm168, %v163, %v165
  %v171 = vsel %vm168, %v161, %v163
  %v172 = vsel %vm168, %v167, %v161
  %v174 = vlaneseq
  %v175 = vshrl.u32 %v174, 7
  %v176 = vsub.s32 0, %v175
  %v177 = vrot.slane %v37, %v176
  %v178 = vlaneseq
  %v179 = vshrl.u32 %v178, 7
  %v180 = vsub.s32 2, %v179
  %v181 = vrot.slane %v37, %v180
  %v182 = vlaneseq
  %v183 = vshrl.u32 %v182, 7
  %v184 = vsub.s32 4, %v183
  %v185 = vrot.slane %v37, %v184
  %v186 = vlaneseq
  %v187 = vshrl.u32 %v186, 7
  %v188 = vsub.s32 6, %v187
  %v189 = vrot.slane %v37, %v188
  %v194 = vlaneseq
  %v195 = vshrl.u32 %v194, 7
  %v196 = vsub.s32 0, %v195
  %v197 = vrot.slane %v177, %v196
  %v198 = vlaneseq
  %v199 = vshrl.u32 %v198, 7
  %v200 = vsub.s32 0, %v199
  %v201 = vrot.slane %v181, %v200
  %v202 = vlaneseq
  %v203 = vshrl.u32 %v202, 7
  %v204 = vsub.s32 0, %v203
  %v205 = vrot.slane %v185, %v204
  %v206 = vlaneseq
  %v207 = vshrl.u32 %v206, 7
  %v208 = vsub.s32 0, %v207
  %v209 = vrot.slane %v189, %v208
  %v210 = vmul.f32 %v172, %v197
  %v211 = vmul.f32 %v171, %v201
  %v212 = vmul.f32 %v170, %v205
  %v213 = vmul.f32 %v169, %v209
  %214 = vrot.lane.b32.xlu0 %v46, 1
  %v215 = vpop.permute.xlu0 %214
  %216 = vrot.lane.b32.xlu0 %v47, 1
  %v217 = vpop.permute.xlu0 %216
  %218 = vrot.lane.b32.xlu0 %v48, 1
  %v219 = vpop.permute.xlu0 %218
  %220 = vrot.lane.b32.xlu0 %v49, 1
  %v221 = vpop.permute.xlu0 %220
  %vm222 = vcmp.lt.s32.totalorder %v59, 1
  %v223 = vsel %vm222, %v219, %v221
  %v224 = vsel %vm222, %v217, %v219
  %v225 = vsel %vm222, %v215, %v217
  %v226 = vsel %vm222, %v221, %v215
  %v227 = vlaneseq
  %v228 = vshrl.u32 %v227, 7
  %v229 = vsub.s32 1, %v228
  %v230 = vrot.slane %v30, %v229
  %v231 = vlaneseq
  %v232 = vshrl.u32 %v231, 7
  %v233 = vsub.s32 3, %v232
  %v234 = vrot.slane %v30, %v233
  %v235 = vlaneseq
  %v236 = vshrl.u32 %v235, 7
  %v237 = vsub.s32 5, %v236
  %v238 = vrot.slane %v30, %v237
  %v239 = vlaneseq
  %v240 = vshrl.u32 %v239, 7
  %v241 = vsub.s32 7, %v240
  %v242 = vrot.slane %v30, %v241
  %v247 = vlaneseq
  %v248 = vshrl.u32 %v247, 7
  %v249 = vsub.s32 1, %v248
  %v250 = vrot.slane %v230, %v249
  %v251 = vlaneseq
  %v252 = vshrl.u32 %v251, 7
  %v253 = vsub.s32 1, %v252
  %v254 = vrot.slane %v234, %v253
  %v255 = vlaneseq
  %v256 = vshrl.u32 %v255, 7
  %v257 = vsub.s32 1, %v256
  %v258 = vrot.slane %v238, %v257
  %v259 = vlaneseq
  %v260 = vshrl.u32 %v259, 7
  %v261 = vsub.s32 1, %v260
  %v262 = vrot.slane %v242, %v261
  %v263 = vmul.f32 %v226, %v250
  %v264 = vmul.f32 %v225, %v254
  %v265 = vmul.f32 %v224, %v258
  %v266 = vmul.f32 %v223, %v262
  %267 = vrot.lane.b32.xlu0 %v46, 127
  %v268 = vpop.permute.xlu0 %267
  %269 = vrot.lane.b32.xlu0 %v47, 127
  %v270 = vpop.permute.xlu0 %269
  %271 = vrot.lane.b32.xlu0 %v48, 127
  %v272 = vpop.permute.xlu0 %271
  %273 = vrot.lane.b32.xlu0 %v49, 127
  %v274 = vpop.permute.xlu0 %273
  %vm275 = vcmp.lt.s32.totalorder %v59, 127
  %v276 = vsel %vm275, %v272, %v274
  %v277 = vsel %vm275, %v270, %v272
  %v278 = vsel %vm275, %v268, %v270
  %v279 = vsel %vm275, %v274, %v268
  %v281 = vlaneseq
  %v282 = vshrl.u32 %v281, 7
  %v283 = vsub.s32 1, %v282
  %v284 = vrot.slane %v38, %v283
  %v285 = vlaneseq
  %v286 = vshrl.u32 %v285, 7
  %v287 = vsub.s32 3, %v286
  %v288 = vrot.slane %v38, %v287
  %v289 = vlaneseq
  %v290 = vshrl.u32 %v289, 7
  %v291 = vsub.s32 5, %v290
  %v292 = vrot.slane %v38, %v291
  %v293 = vlaneseq
  %v294 = vshrl.u32 %v293, 7
  %v295 = vsub.s32 7, %v294
  %v296 = vrot.slane %v38, %v295
  %v301 = vlaneseq
  %v302 = vshrl.u32 %v301, 7
  %v303 = vsub.s32 1, %v302
  %v304 = vrot.slane %v284, %v303
  %v305 = vlaneseq
  %v306 = vshrl.u32 %v305, 7
  %v307 = vsub.s32 1, %v306
  %v308 = vrot.slane %v288, %v307
  %v309 = vlaneseq
  %v310 = vshrl.u32 %v309, 7
  %v311 = vsub.s32 1, %v310
  %v312 = vrot.slane %v292, %v311
  %v313 = vlaneseq
  %v314 = vshrl.u32 %v313, 7
  %v315 = vsub.s32 1, %v314
  %v316 = vrot.slane %v296, %v315
  %v317 = vmul.f32 %v278, %v304
  %v318 = vmul.f32 %v277, %v308
  %v319 = vmul.f32 %v276, %v312
  %v320 = vmul.f32 %v279, %v316
  %321 = vrot.lane.b32.xlu0 %v46, 113
  %v322 = vpop.permute.xlu0 %321
  %323 = vrot.lane.b32.xlu0 %v47, 113
  %v324 = vpop.permute.xlu0 %323
  %325 = vrot.lane.b32.xlu0 %v48, 113
  %v326 = vpop.permute.xlu0 %325
  %327 = vrot.lane.b32.xlu0 %v49, 113
  %v328 = vpop.permute.xlu0 %327
  %vm329 = vcmp.lt.s32.totalorder %v59, 113
  %v330 = vsel %vm329, %v326, %v328
  %v331 = vsel %vm329, %v324, %v326
  %v332 = vsel %vm329, %v322, %v324
  %v333 = vsel %vm329, %v328, %v322
  %v335 = vlaneseq
  %v336 = vshrl.u32 %v335, 7
  %v337 = vsub.s32 0, %v336
  %v338 = vrot.slane %v41, %v337
  %v339 = vlaneseq
  %v340 = vshrl.u32 %v339, 7
  %v341 = vsub.s32 2, %v340
  %v342 = vrot.slane %v41, %v341
  %v343 = vlaneseq
  %v344 = vshrl.u32 %v343, 7
  %v345 = vsub.s32 4, %v344
  %v346 = vrot.slane %v41, %v345
  %v347 = vlaneseq
  %v348 = vshrl.u32 %v347, 7
  %v349 = vsub.s32 6, %v348
  %v350 = vrot.slane %v41, %v349
  %v355 = vlaneseq
  %v356 = vshrl.u32 %v355, 7
  %v357 = vsub.s32 0, %v356
  %v358 = vrot.slane %v338, %v357
  %v359 = vlaneseq
  %v360 = vshrl.u32 %v359, 7
  %v361 = vsub.s32 0, %v360
  %v362 = vrot.slane %v342, %v361
  %v363 = vlaneseq
  %v364 = vshrl.u32 %v363, 7
  %v365 = vsub.s32 0, %v364
  %v366 = vrot.slane %v346, %v365
  %v367 = vlaneseq
  %v368 = vshrl.u32 %v367, 7
  %v369 = vsub.s32 0, %v368
  %v370 = vrot.slane %v350, %v369
  %v371 = vmul.f32 %v332, %v358
  %v372 = vmul.f32 %v331, %v362
  %v373 = vmul.f32 %v330, %v366
  %v374 = vmul.f32 %v333, %v370
  %375 = vrot.lane.b32.xlu0 %v46, 112
  %v376 = vpop.permute.xlu0 %375
  %377 = vrot.lane.b32.xlu0 %v47, 112
  %v378 = vpop.permute.xlu0 %377
  %379 = vrot.lane.b32.xlu0 %v48, 112
  %v380 = vpop.permute.xlu0 %379
  %381 = vrot.lane.b32.xlu0 %v49, 112
  %v382 = vpop.permute.xlu0 %381
  %vm383 = vcmp.lt.s32.totalorder %v59, 112
  %v384 = vsel %vm383, %v380, %v382
  %v385 = vsel %vm383, %v378, %v380
  %v386 = vsel %vm383, %v376, %v378
  %v387 = vsel %vm383, %v382, %v376
  %v388 = vlaneseq
  %v389 = vshrl.u32 %v388, 7
  %v390 = vsub.s32 0, %v389
  %v391 = vrot.slane %v38, %v390
  %v392 = vlaneseq
  %v393 = vshrl.u32 %v392, 7
  %v394 = vsub.s32 2, %v393
  %v395 = vrot.slane %v38, %v394
  %v396 = vlaneseq
  %v397 = vshrl.u32 %v396, 7
  %v398 = vsub.s32 4, %v397
  %v399 = vrot.slane %v38, %v398
  %v400 = vlaneseq
  %v401 = vshrl.u32 %v400, 7
  %v402 = vsub.s32 6, %v401
  %v403 = vrot.slane %v38, %v402
  %v408 = vlaneseq
  %v409 = vshrl.u32 %v408, 7
  %v410 = vsub.s32 0, %v409
  %v411 = vrot.slane %v391, %v410
  %v412 = vlaneseq
  %v413 = vshrl.u32 %v412, 7
  %v414 = vsub.s32 0, %v413
  %v415 = vrot.slane %v395, %v414
  %v416 = vlaneseq
  %v417 = vshrl.u32 %v416, 7
  %v418 = vsub.s32 0, %v417
  %v419 = vrot.slane %v399, %v418
  %v420 = vlaneseq
  %v421 = vshrl.u32 %v420, 7
  %v422 = vsub.s32 0, %v421
  %v423 = vrot.slane %v403, %v422
  %v424 = vmul.f32 %v386, %v411
  %v425 = vmul.f32 %v385, %v415
  %v426 = vmul.f32 %v384, %v419
  %v427 = vmul.f32 %v387, %v423
  %428 = vrot.lane.b32.xlu0 %v46, 111
  %v429 = vpop.permute.xlu0 %428
  %430 = vrot.lane.b32.xlu0 %v47, 111
  %v431 = vpop.permute.xlu0 %430
  %432 = vrot.lane.b32.xlu0 %v48, 111
  %v433 = vpop.permute.xlu0 %432
  %434 = vrot.lane.b32.xlu0 %v49, 111
  %v435 = vpop.permute.xlu0 %434
  %vm436 = vcmp.lt.s32.totalorder %v59, 111
  %v437 = vsel %vm436, %v433, %v435
  %v438 = vsel %vm436, %v431, %v433
  %v439 = vsel %vm436, %v429, %v431
  %v440 = vsel %vm436, %v435, %v429
  %v442 = vlaneseq
  %v443 = vshrl.u32 %v442, 7
  %v444 = vsub.s32 0, %v443
  %v445 = vrot.slane %v44, %v444
  %v446 = vlaneseq
  %v447 = vshrl.u32 %v446, 7
  %v448 = vsub.s32 2, %v447
  %v449 = vrot.slane %v44, %v448
  %v450 = vlaneseq
  %v451 = vshrl.u32 %v450, 7
  %v452 = vsub.s32 4, %v451
  %v453 = vrot.slane %v44, %v452
  %v454 = vlaneseq
  %v455 = vshrl.u32 %v454, 7
  %v456 = vsub.s32 6, %v455
  %v457 = vrot.slane %v44, %v456
  %v462 = vlaneseq
  %v463 = vshrl.u32 %v462, 7
  %v464 = vsub.s32 0, %v463
  %v465 = vrot.slane %v445, %v464
  %v466 = vlaneseq
  %v467 = vshrl.u32 %v466, 7
  %v468 = vsub.s32 0, %v467
  %v469 = vrot.slane %v449, %v468
  %v470 = vlaneseq
  %v471 = vshrl.u32 %v470, 7
  %v472 = vsub.s32 0, %v471
  %v473 = vrot.slane %v453, %v472
  %v474 = vlaneseq
  %v475 = vshrl.u32 %v474, 7
  %v476 = vsub.s32 0, %v475
  %v477 = vrot.slane %v457, %v476
  %v478 = vmul.f32 %v439, %v465
  %v479 = vmul.f32 %v438, %v469
  %v480 = vmul.f32 %v437, %v473
  %v481 = vmul.f32 %v440, %v477
  %v482 = vld [vmem:[%s1] sm:$0xff]
  %484 = vset.pattern.permute.xlu0 0
  %485 = vperm.xlu0 %484, %v45
  %v486 = vpop.permute.xlu0 %485
  %vm488 = vcmask 588800
  %v490 = vsel %vm488, %v482, 0
  %492 = vmatprep.subr.mxu0 %v103
  %493 = vmatpush1.msra.mxu0 %v102
  %494 = vmatprep.subr.mxu0 %v157
  %495 = vmatpush1.msra.mxu0 %v156
  %496 = vmatprep.subr.mxu0 %v211
  %497 = vmatpush1.msra.mxu0 %v210
  %498 = vmatprep.subr.mxu0 %v264
  %499 = vmatpush1.msra.mxu0 %v263
  %500 = vmatprep.subr.mxu0 %v47
  %501 = vmatpush1.msra.mxu0 %v46
  %502 = vmatprep.subr.mxu0 %v318
  %503 = vmatpush1.msra.mxu0 %v317
  %504 = vmatprep.subr.mxu0 %v372
  %505 = vmatpush1.msra.mxu0 %v371
  %506 = vmatprep.subr.mxu0 %v425
  %507 = vmatpush1.msra.mxu0 %v424
  %508 = vmatprep.subr.mxu0 %v479
  %509 = vmatpush1.msra.mxu0 %v478
  %510 = vmatprep.subr.mxu0 0.0
  %511 = vmatpush1.msra.mxu0 0.0
  %512 = vmatprep.subr.mxu0 0.0
  %513 = vmatpush1.msra.mxu0 0.0
  %514 = vmatprep.subr.mxu0 0.0
  %515 = vmatpush1.msra.mxu0 0.0
  %516 = vmatprep.subr.mxu0 0.0
  %517 = vmatpush1.msra.mxu0 0.0
  %518 = vmatprep.subr.mxu0 0.0
  %519 = vmatpush1.msra.mxu0 0.0
  %520 = vmatprep.subr.mxu0 0.0
  %521 = vmatpush1.msra.mxu0 0.0
  %522 = vmatprep.subr.mxu0 0.0
  %523 = vmatpush1.msra.mxu0 0.0
  %524 = vmatprep.subr.mxu0 0.0
  %525 = vmatpush1.msra.mxu0 0.0
  %526 = vmatprep.subr.mxu0 0.0
  %527 = vmatpush1.msra.mxu0 0.0
  %528 = vmatprep.subr.mxu0 0.0
  %529 = vmatpush1.msra.mxu0 0.0
  %530 = vmatprep.subr.mxu0 0.0
  %531 = vmatpush1.msra.mxu0 0.0
  %532 = vmatprep.subr.mxu0 0.0
  %533 = vmatpush1.msra.mxu0 0.0
  %534 = vmatprep.subr.mxu0 0.0
  %535 = vmatpush1.msra.mxu0 0.0
  %536 = vmatprep.subr.mxu0 0.0
  %537 = vmatpush1.msra.mxu0 0.0
  %538 = vmatprep.subr.mxu0 0.0
  %539 = vmatpush1.msra.mxu0 0.0
  %540 = vmatprep.subr.mxu0 0.0
  %541 = vmatpush1.msra.mxu0 0.0
  %542 = vmatprep.subr.mxu0 0.0
  %543 = vmatpush1.msra.mxu0 0.0
  %544 = vmatprep.subr.mxu0 0.0
  %545 = vmatpush1.msra.mxu0 0.0
  %546 = vmatprep.subr.mxu0 0.0
  %547 = vmatpush1.msra.mxu0 0.0
  %548 = vmatprep.subr.mxu0 0.0
  %549 = vmatpush1.msra.mxu0 0.0
  %550 = vmatprep.subr.mxu0 0.0
  %551 = vmatpush1.msra.mxu0 0.0
  %552 = vmatprep.subr.mxu0 0.0
  %553 = vmatpush1.msra.mxu0 0.0
  %554 = vmatprep.subr.mxu0 0.0
  %555 = vmatpush1.msra.mxu0 0.0
  %556 = vmatprep.mubr.f32.mxu0 0.0
  %557 = vmatmul.mubr.f32.gmra.mrb[0].mxu0 %v490
  %v558 = vpop.f32.mrb[0].mxu0
  %v559 = vadd.f32 %v486, %v558
  %v560 = vpop.f32.mrb[0].mxu0
  %v561 = vadd.f32 %v486, %v560
  %562 = vdwg.mxu0
  %563 = vmatprep.subr.mxu0 %v105
  %564 = vmatpush1.msra.mxu0 %v104
  %565 = vmatprep.subr.mxu0 %v159
  %566 = vmatpush1.msra.mxu0 %v158
  %567 = vmatprep.subr.mxu0 %v213
  %568 = vmatpush1.msra.mxu0 %v212
  %569 = vmatprep.subr.mxu0 %v266
  %570 = vmatpush1.msra.mxu0 %v265
  %571 = vmatprep.subr.mxu0 %v49
  %572 = vmatpush1.msra.mxu0 %v48
  %573 = vmatprep.subr.mxu0 %v320
  %574 = vmatpush1.msra.mxu0 %v319
  %575 = vmatprep.subr.mxu0 %v374
  %576 = vmatpush1.msra.mxu0 %v373
  %577 = vmatprep.subr.mxu0 %v427
  %578 = vmatpush1.msra.mxu0 %v426
  %579 = vmatprep.subr.mxu0 %v481
  %580 = vmatpush1.msra.mxu0 %v480
  %581 = vmatprep.subr.mxu0 0.0
  %582 = vmatpush1.msra.mxu0 0.0
  %583 = vmatprep.subr.mxu0 0.0
  %584 = vmatpush1.msra.mxu0 0.0
  %585 = vmatprep.subr.mxu0 0.0
  %586 = vmatpush1.msra.mxu0 0.0
  %587 = vmatprep.subr.mxu0 0.0
  %588 = vmatpush1.msra.mxu0 0.0
  %589 = vmatprep.subr.mxu0 0.0
  %590 = vmatpush1.msra.mxu0 0.0
  %591 = vmatprep.subr.mxu0 0.0
  %592 = vmatpush1.msra.mxu0 0.0
  %593 = vmatprep.subr.mxu0 0.0
  %594 = vmatpush1.msra.mxu0 0.0
  %595 = vmatprep.subr.mxu0 0.0
  %596 = vmatpush1.msra.mxu0 0.0
  %597 = vmatprep.subr.mxu0 0.0
  %598 = vmatpush1.msra.mxu0 0.0
  %599 = vmatprep.subr.mxu0 0.0
  %600 = vmatpush1.msra.mxu0 0.0
  %601 = vmatprep.subr.mxu0 0.0
  %602 = vmatpush1.msra.mxu0 0.0
  %603 = vmatprep.subr.mxu0 0.0
  %604 = vmatpush1.msra.mxu0 0.0
  %605 = vmatprep.subr.mxu0 0.0
  %606 = vmatpush1.msra.mxu0 0.0
  %607 = vmatprep.subr.mxu0 0.0
  %608 = vmatpush1.msra.mxu0 0.0
  %609 = vmatprep.subr.mxu0 0.0
  %610 = vmatpush1.msra.mxu0 0.0
  %611 = vmatprep.subr.mxu0 0.0
  %612 = vmatpush1.msra.mxu0 0.0
  %613 = vmatprep.subr.mxu0 0.0
  %614 = vmatpush1.msra.mxu0 0.0
  %615 = vmatprep.subr.mxu0 0.0
  %616 = vmatpush1.msra.mxu0 0.0
  %617 = vmatprep.subr.mxu0 0.0
  %618 = vmatpush1.msra.mxu0 0.0
  %619 = vmatprep.subr.mxu0 0.0
  %620 = vmatpush1.msra.mxu0 0.0
  %621 = vmatprep.subr.mxu0 0.0
  %622 = vmatpush1.msra.mxu0 0.0
  %623 = vmatprep.subr.mxu0 0.0
  %624 = vmatpush1.msra.mxu0 0.0
  %625 = vmatprep.subr.mxu0 0.0
  %626 = vmatpush1.msra.mxu0 0.0
  %627 = vmatprep.mubr.f32.mxu0 0.0
  %628 = vmatmul.mubr.f32.gmra.mrb[0].mxu0 %v490
  %v629 = vpop.f32.mrb[0].mxu0
  %v630 = vadd.f32 %v486, %v629
  %v631 = vpop.f32.mrb[0].mxu0
  %v632 = vadd.f32 %v486, %v631
  %633 = vdwg.mxu0
  %v634 = vmax.f32 %v559, 0.0
  %v635 = vmax.f32 %v561, 0.0
  %v636 = vmax.f32 %v630, 0.0
  %v637 = vmax.f32 %v632, 0.0
  %638 = vrot.lane.b32.xlu0 %v634, 17
  %v639 = vpop.permute.xlu0 %638
  %640 = vrot.lane.b32.xlu0 %v635, 17
  %v641 = vpop.permute.xlu0 %640
  %642 = vrot.lane.b32.xlu0 %v636, 17
  %v643 = vpop.permute.xlu0 %642
  %644 = vrot.lane.b32.xlu0 %v637, 17
  %v645 = vpop.permute.xlu0 %644
  %v646 = vsel %vm60, %v643, %v645
  %v647 = vsel %vm60, %v641, %v643
  %v648 = vsel %vm60, %v639, %v641
  %v649 = vsel %vm60, %v645, %v639
  %v650 = vmul.f32 %v649, %v89
  %v651 = vmul.f32 %v648, %v93
  %v652 = vmul.f32 %v647, %v97
  %v653 = vmul.f32 %v646, %v101
  %654 = vrot.lane.b32.xlu0 %v634, 16
  %v655 = vpop.permute.xlu0 %654
  %656 = vrot.lane.b32.xlu0 %v635, 16
  %v657 = vpop.permute.xlu0 %656
  %658 = vrot.lane.b32.xlu0 %v636, 16
  %v659 = vpop.permute.xlu0 %658
  %660 = vrot.lane.b32.xlu0 %v637, 16
  %v661 = vpop.permute.xlu0 %660
  %v662 = vsel %vm114, %v659, %v661
  %v663 = vsel %vm114, %v657, %v659
  %v664 = vsel %vm114, %v655, %v657
  %v665 = vsel %vm114, %v661, %v655
  %v666 = vmul.f32 %v665, %v143
  %v667 = vmul.f32 %v664, %v147
  %v668 = vmul.f32 %v663, %v151
  %v669 = vmul.f32 %v662, %v155
  %670 = vrot.lane.b32.xlu0 %v634, 15
  %v671 = vpop.permute.xlu0 %670
  %672 = vrot.lane.b32.xlu0 %v635, 15
  %v673 = vpop.permute.xlu0 %672
  %674 = vrot.lane.b32.xlu0 %v636, 15
  %v675 = vpop.permute.xlu0 %674
  %676 = vrot.lane.b32.xlu0 %v637, 15
  %v677 = vpop.permute.xlu0 %676
  %v678 = vsel %vm168, %v675, %v677
  %v679 = vsel %vm168, %v673, %v675
  %v680 = vsel %vm168, %v671, %v673
  %v681 = vsel %vm168, %v677, %v671
  %v682 = vmul.f32 %v681, %v197
  %v683 = vmul.f32 %v680, %v201
  %v684 = vmul.f32 %v679, %v205
  %v685 = vmul.f32 %v678, %v209
  %686 = vrot.lane.b32.xlu0 %v634, 1
  %v687 = vpop.permute.xlu0 %686
  %688 = vrot.lane.b32.xlu0 %v635, 1
  %v689 = vpop.permute.xlu0 %688
  %690 = vrot.lane.b32.xlu0 %v636, 1
  %v691 = vpop.permute.xlu0 %690
  %692 = vrot.lane.b32.xlu0 %v637, 1
  %v693 = vpop.permute.xlu0 %692
  %v694 = vsel %vm222, %v691, %v693
  %v695 = vsel %vm222, %v689, %v691
  %v696 = vsel %vm222, %v687, %v689
  %v697 = vsel %vm222, %v693, %v687
  %v698 = vmul.f32 %v697, %v250
  %v699 = vmul.f32 %v696, %v254
  %v700 = vmul.f32 %v695, %v258
  %v701 = vmul.f32 %v694, %v262
  %702 = vrot.lane.b32.xlu0 %v634, 127
  %v703 = vpop.permute.xlu0 %702
  %704 = vrot.lane.b32.xlu0 %v635, 127
  %v705 = vpop.permute.xlu0 %704
  %706 = vrot.lane.b32.xlu0 %v636, 127
  %v707 = vpop.permute.xlu0 %706
  %708 = vrot.lane.b32.xlu0 %v637, 127
  %v709 = vpop.permute.xlu0 %708
  %v710 = vsel %vm275, %v707, %v709
  %v711 = vsel %vm275, %v705, %v707
  %v712 = vsel %vm275, %v703, %v705
  %v713 = vsel %vm275, %v709, %v703
  %v714 = vmul.f32 %v712, %v304
  %v715 = vmul.f32 %v711, %v308
  %v716 = vmul.f32 %v710, %v312
  %v717 = vmul.f32 %v713, %v316
  %718 = vrot.lane.b32.xlu0 %v634, 113
  %v719 = vpop.permute.xlu0 %718
  %720 = vrot.lane.b32.xlu0 %v635, 113
  %v721 = vpop.permute.xlu0 %720
  %722 = vrot.lane.b32.xlu0 %v636, 113
  %v723 = vpop.permute.xlu0 %722
  %724 = vrot.lane.b32.xlu0 %v637, 113
  %v725 = vpop.permute.xlu0 %724
  %v726 = vsel %vm329, %v723, %v725
  %v727 = vsel %vm329, %v721, %v723
  %v728 = vsel %vm329, %v719, %v721
  %v729 = vsel %vm329, %v725, %v719
  %v730 = vmul.f32 %v728, %v358
  %v731 = vmul.f32 %v727, %v362
  %v732 = vmul.f32 %v726, %v366
  %v733 = vmul.f32 %v729, %v370
  %734 = vrot.lane.b32.xlu0 %v634, 112
  %v735 = vpop.permute.xlu0 %734
  %736 = vrot.lane.b32.xlu0 %v635, 112
  %v737 = vpop.permute.xlu0 %736
  %738 = vrot.lane.b32.xlu0 %v636, 112
  %v739 = vpop.permute.xlu0 %738
  %740 = vrot.lane.b32.xlu0 %v637, 112
  %v741 = vpop.permute.xlu0 %740
  %v742 = vsel %vm383, %v739, %v741
  %v743 = vsel %vm383, %v737, %v739
  %v744 = vsel %vm383, %v735, %v737
  %v745 = vsel %vm383, %v741, %v735
  %v746 = vmul.f32 %v744, %v411
  %v747 = vmul.f32 %v743, %v415
  %v748 = vmul.f32 %v742, %v419
  %v749 = vmul.f32 %v745, %v423
  %750 = vrot.lane.b32.xlu0 %v634, 111
  %v751 = vpop.permute.xlu0 %750
  %752 = vrot.lane.b32.xlu0 %v635, 111
  %v753 = vpop.permute.xlu0 %752
  %754 = vrot.lane.b32.xlu0 %v636, 111
  %v755 = vpop.permute.xlu0 %754
  %756 = vrot.lane.b32.xlu0 %v637, 111
  %v757 = vpop.permute.xlu0 %756
  %v758 = vsel %vm436, %v755, %v757
  %v759 = vsel %vm436, %v753, %v755
  %v760 = vsel %vm436, %v751, %v753
  %v761 = vsel %vm436, %v757, %v751
  %v762 = vmul.f32 %v760, %v465
  %v763 = vmul.f32 %v759, %v469
  %v764 = vmul.f32 %v758, %v473
  %v765 = vmul.f32 %v761, %v477
  %v766 = vld [vmem:[%s2] sm:$0xff]
  %767 = vset.pattern.permute.xlu0 1
  %768 = vperm.xlu0 %767, %v45
  %v769 = vpop.permute.xlu0 %768
  %v772 = vsel %vm488, %v766, 0
  %774 = vmatprep.subr.mxu0 %v651
  %775 = vmatpush1.msra.mxu0 %v650
  %776 = vmatprep.subr.mxu0 %v667
  %777 = vmatpush1.msra.mxu0 %v666
  %778 = vmatprep.subr.mxu0 %v683
  %779 = vmatpush1.msra.mxu0 %v682
  %780 = vmatprep.subr.mxu0 %v699
  %781 = vmatpush1.msra.mxu0 %v698
  %782 = vmatprep.subr.mxu0 %v635
  %783 = vmatpush1.msra.mxu0 %v634
  %784 = vmatprep.subr.mxu0 %v715
  %785 = vmatpush1.msra.mxu0 %v714
  %786 = vmatprep.subr.mxu0 %v731
  %787 = vmatpush1.msra.mxu0 %v730
  %788 = vmatprep.subr.mxu0 %v747
  %789 = vmatpush1.msra.mxu0 %v746
  %790 = vmatprep.subr.mxu0 %v763
  %791 = vmatpush1.msra.mxu0 %v762
  %792 = vmatprep.subr.mxu0 0.0
  %793 = vmatpush1.msra.mxu0 0.0
  %794 = vmatprep.subr.mxu0 0.0
  %795 = vmatpush1.msra.mxu0 0.0
  %796 = vmatprep.subr.mxu0 0.0
  %797 = vmatpush1.msra.mxu0 0.0
  %798 = vmatprep.subr.mxu0 0.0
  %799 = vmatpush1.msra.mxu0 0.0
  %800 = vmatprep.subr.mxu0 0.0
  %801 = vmatpush1.msra.mxu0 0.0
  %802 = vmatprep.subr.mxu0 0.0
  %803 = vmatpush1.msra.mxu0 0.0
  %804 = vmatprep.subr.mxu0 0.0
  %805 = vmatpush1.msra.mxu0 0.0
  %806 = vmatprep.subr.mxu0 0.0
  %807 = vmatpush1.msra.mxu0 0.0
  %808 = vmatprep.subr.mxu0 0.0
  %809 = vmatpush1.msra.mxu0 0.0
  %810 = vmatprep.subr.mxu0 0.0
  %811 = vmatpush1.msra.mxu0 0.0
  %812 = vmatprep.subr.mxu0 0.0
  %813 = vmatpush1.msra.mxu0 0.0
  %814 = vmatprep.subr.mxu0 0.0
  %815 = vmatpush1.msra.mxu0 0.0
  %816 = vmatprep.subr.mxu0 0.0
  %817 = vmatpush1.msra.mxu0 0.0
  %818 = vmatprep.subr.mxu0 0.0
  %819 = vmatpush1.msra.mxu0 0.0
  %820 = vmatprep.subr.mxu0 0.0
  %821 = vmatpush1.msra.mxu0 0.0
  %822 = vmatprep.subr.mxu0 0.0
  %823 = vmatpush1.msra.mxu0 0.0
  %824 = vmatprep.subr.mxu0 0.0
  %825 = vmatpush1.msra.mxu0 0.0
  %826 = vmatprep.subr.mxu0 0.0
  %827 = vmatpush1.msra.mxu0 0.0
  %828 = vmatprep.subr.mxu0 0.0
  %829 = vmatpush1.msra.mxu0 0.0
  %830 = vmatprep.subr.mxu0 0.0
  %831 = vmatpush1.msra.mxu0 0.0
  %832 = vmatprep.subr.mxu0 0.0
  %833 = vmatpush1.msra.mxu0 0.0
  %834 = vmatprep.subr.mxu0 0.0
  %835 = vmatpush1.msra.mxu0 0.0
  %836 = vmatprep.subr.mxu0 0.0
  %837 = vmatpush1.msra.mxu0 0.0
  %838 = vmatprep.mubr.f32.mxu0 0.0
  %839 = vmatmul.mubr.f32.gmra.mrb[0].mxu0 %v772
  %v840 = vpop.f32.mrb[0].mxu0
  %v841 = vadd.f32 %v769, %v840
  %v842 = vpop.f32.mrb[0].mxu0
  %v843 = vadd.f32 %v769, %v842
  %844 = vdwg.mxu0
  %845 = vmatprep.subr.mxu0 %v653
  %846 = vmatpush1.msra.mxu0 %v652
  %847 = vmatprep.subr.mxu0 %v669
  %848 = vmatpush1.msra.mxu0 %v668
  %849 = vmatprep.subr.mxu0 %v685
  %850 = vmatpush1.msra.mxu0 %v684
  %851 = vmatprep.subr.mxu0 %v701
  %852 = vmatpush1.msra.mxu0 %v700
  %853 = vmatprep.subr.mxu0 %v637
  %854 = vmatpush1.msra.mxu0 %v636
  %855 = vmatprep.subr.mxu0 %v717
  %856 = vmatpush1.msra.mxu0 %v716
  %857 = vmatprep.subr.mxu0 %v733
  %858 = vmatpush1.msra.mxu0 %v732
  %859 = vmatprep.subr.mxu0 %v749
  %860 = vmatpush1.msra.mxu0 %v748
  %861 = vmatprep.subr.mxu0 %v765
  %862 = vmatpush1.msra.mxu0 %v764
  %863 = vmatprep.subr.mxu0 0.0
  %864 = vmatpush1.msra.mxu0 0.0
  %865 = vmatprep.subr.mxu0 0.0
  %866 = vmatpush1.msra.mxu0 0.0
  %867 = vmatprep.subr.mxu0 0.0
  %868 = vmatpush1.msra.mxu0 0.0
  %869 = vmatprep.subr.mxu0 0.0
  %870 = vmatpush1.msra.mxu0 0.0
  %871 = vmatprep.subr.mxu0 0.0
  %872 = vmatpush1.msra.mxu0 0.0
  %873 = vmatprep.subr.mxu0 0.0
  %874 = vmatpush1.msra.mxu0 0.0
  %875 = vmatprep.subr.mxu0 0.0
  %876 = vmatpush1.msra.mxu0 0.0
  %877 = vmatprep.subr.mxu0 0.0
  %878 = vmatpush1.msra.mxu0 0.0
  %879 = vmatprep.subr.mxu0 0.0
  %880 = vmatpush1.msra.mxu0 0.0
  %881 = vmatprep.subr.mxu0 0.0
  %882 = vmatpush1.msra.mxu0 0.0
  %883 = vmatprep.subr.mxu0 0.0
  %884 = vmatpush1.msra.mxu0 0.0
  %885 = vmatprep.subr.mxu0 0.0
  %886 = vmatpush1.msra.mxu0 0.0
  %887 = vmatprep.subr.mxu0 0.0
  %888 = vmatpush1.msra.mxu0 0.0
  %889 = vmatprep.subr.mxu0 0.0
  %890 = vmatpush1.msra.mxu0 0.0
  %891 = vmatprep.subr.mxu0 0.0
  %892 = vmatpush1.msra.mxu0 0.0
  %893 = vmatprep.subr.mxu0 0.0
  %894 = vmatpush1.msra.mxu0 0.0
  %895 = vmatprep.subr.mxu0 0.0
  %896 = vmatpush1.msra.mxu0 0.0
  %897 = vmatprep.subr.mxu0 0.0
  %898 = vmatpush1.msra.mxu0 0.0
  %899 = vmatprep.subr.mxu0 0.0
  %900 = vmatpush1.msra.mxu0 0.0
  %901 = vmatprep.subr.mxu0 0.0
  %902 = vmatpush1.msra.mxu0 0.0
  %903 = vmatprep.subr.mxu0 0.0
  %904 = vmatpush1.msra.mxu0 0.0
  %905 = vmatprep.subr.mxu0 0.0
  %906 = vmatpush1.msra.mxu0 0.0
  %907 = vmatprep.subr.mxu0 0.0
  %908 = vmatpush1.msra.mxu0 0.0
  %909 = vmatprep.mubr.f32.mxu0 0.0
  %910 = vmatmul.mubr.f32.gmra.mrb[0].mxu0 %v772
  %v911 = vpop.f32.mrb[0].mxu0
  %v912 = vadd.f32 %v769, %v911
  %v913 = vpop.f32.mrb[0].mxu0
  %v914 = vadd.f32 %v769, %v913
  %915 = vdwg.mxu0
  %v916 = vmax.f32 %v841, 0.0
  %v917 = vmax.f32 %v843, 0.0
  %v918 = vmax.f32 %v912, 0.0
  %v919 = vmax.f32 %v914, 0.0
  %920 = vset.pattern.permute.xlu0 2
  %921 = vperm.xlu0 %920, %v45
  %v922 = vpop.permute.xlu0 %921
  %v924 = vmul.f32 %v916, %v922
  %v925 = vmul.f32 %v917, %v922
  %v926 = vmul.f32 %v918, %v922
  %v927 = vmul.f32 %v919, %v922
  %v928 = vrot.slane %v924, 4
  %v929 = vadd.f32 %v924, %v928
  %v930 = vrot.slane %v929, 2
  %v931 = vadd.f32 %v929, %v930
  %v932 = vrot.slane %v931, 1
  %v933 = vadd.f32 %v931, %v932
  %v934 = vrot.slane %v925, 4
  %v935 = vadd.f32 %v925, %v934
  %v936 = vrot.slane %v935, 2
  %v937 = vadd.f32 %v935, %v936
  %v938 = vrot.slane %v937, 1
  %v939 = vadd.f32 %v937, %v938
  %v940 = vrot.slane %v926, 4
  %v941 = vadd.f32 %v926, %v940
  %v942 = vrot.slane %v941, 2
  %v943 = vadd.f32 %v941, %v942
  %v944 = vrot.slane %v943, 1
  %v945 = vadd.f32 %v943, %v944
  %v946 = vrot.slane %v927, 4
  %v947 = vadd.f32 %v927, %v946
  %v948 = vrot.slane %v947, 2
  %v949 = vadd.f32 %v947, %v948
  %v950 = vrot.slane %v949, 1
  %v951 = vadd.f32 %v949, %v950
  %952 = vset.pattern.permute.xlu0 3
  %953 = vperm.xlu0 %952, %v45
  %v954 = vpop.permute.xlu0 %953
  %v956 = vadd.f32 %v933, %v954
  %v957 = vadd.f32 %v939, %v954
  %v958 = vadd.f32 %v945, %v954
  %v959 = vadd.f32 %v951, %v954
  %v960 = vxor.u32 %v956, 2147483648
  %v961 = vxor.u32 %v957, 2147483648
  %v962 = vxor.u32 %v958, 2147483648
  %v963 = vxor.u32 %v959, 2147483648
  %v964 = vmul.f32 %v960, 1.442695
  %v965 = vpow.pop %v964
  %v966 = vmul.f32 %v961, 1.442695
  %v967 = vpow.pop %v966
  %v968 = vmul.f32 %v962, 1.442695
  %v969 = vpow.pop %v968
  %v970 = vmul.f32 %v963, 1.442695
  %v971 = vpow.pop %v970
  %v972 = vadd.f32 %v965, 1.0
  %v973 = vadd.f32 %v967, 1.0
  %v974 = vadd.f32 %v969, 1.0
  %v975 = vadd.f32 %v971, 1.0
  %v976 = vrcp.pop %v972
  %v977 = vmul.f32 1.0, %v976
  %v978 = vrcp.pop %v973
  %v979 = vmul.f32 1.0, %v978
  %v980 = vrcp.pop %v974
  %v981 = vmul.f32 1.0, %v980
  %v982 = vrcp.pop %v975
  %v983 = vmul.f32 1.0, %v982
  %v988 = vcombine.low %v977, %v979
  %v989 = vcombine.low %v981, %v983
  %v991 = vunpack.c.l.s4 1966171168
  %v992 = vunpack.c.0.s8 %v991
  %v993 = vlaneseq
  %v994 = vshrl.u32 %v993, 7
  %v995 = vsub.s32 %v992, %v994
  %v996 = vrot.slane %v988, %v995
  %v998 = vunpack.c.l.s4 1966171168
  %v999 = vunpack.c.0.s8 %v998
  %v1000 = vlaneseq
  %v1001 = vshrl.u32 %v1000, 7
  %v1002 = vsub.s32 %v999, %v1001
  %v1003 = vrot.slane %v989, %v1002
  %v1004 = vcombine.low %v996, %v1003
  %v1006 = vunpack.c.l.s4 1966171168
  %v1007 = vunpack.c.0.s8 %v1006
  %v1008 = vlaneseq
  %v1009 = vshrl.u32 %v1008, 7
  %v1010 = vsub.s32 %v1007, %v1009
  %v1011 = vrot.slane %v1004, %v1010
  %v1013 = vlaneseq
  %vm1014 = vcmp.ge.s32.totalorder %v1013, 0
  %vm1015 = vcmp.lt.s32.totalorder %v1013, 512
  %vm1016 = vmand %vm1014, %vm1015
  %1017 = vst.msk [vmem:[%s5] sm:$0xf] %vm1016, %v1011
  // Predicated region
  $region22: #{readout_forward.1} parent=0 // pred_check
    _
  $region23: #{readout_forward.1} parent=0 // pred_check_branch
    %1019 = sbr.rel (0) target = $region25
  $region24: #{readout_forward.1} parent=0 // pred_region
    _
  $region25: #{readout_forward.1} parent=0 // pred_fallthru
    _
  // Predicated region
  $region26: #{readout_forward.1} parent=0 // pred_check
    _
  $region27: #{readout_forward.1} parent=0 // pred_check_branch
    %1021 = sbr.rel (0) target = $region29
  $region28: #{readout_forward.1} parent=0 // pred_region
    _
  $region29: #{readout_forward.1} parent=0 // pred_fallthru
    _

</llo_original>
